<compile_context>
chip_gen: v5e
topology: v5e:2x2
jax: 0.10.0
libtpu: 0.0.40
codegen_flags: <defaults>
</compile_context>

<pallas_src>
import functools

import jax
import jax.numpy as jnp
from jax.experimental import pallas as pl
from jax.experimental.pallas import tpu as pltpu


def _round_up(x, m):
    return ((x + m - 1) // m) * m


def _vmem_budget_bytes():
    """Per-core VMEM budget for this kernel's whole working set."""
    try:
        cap = pltpu.get_tpu_info().vmem_capacity_bytes   # trace-time HW query
    except Exception:
        cap = 64 << 20   # assume the smallest per-core VMEM (v7x) if unknown
    # Stay well inside the per-core capacity (v7x: 64 MiB) while still being
    # large enough to amortize per-grid-step overhead on v5e/v6e (128 MiB).
    return int(min(max(cap // 4, 24 << 20), 36 << 20))


def _choose_block_rows(n, c, itemsize, budget_bytes):
    """Rows per tile, sized so the full double-buffered working set fits."""
    row_mult = max(8, 32 // itemsize)   # sublane packing: f32 -> 8, bf16 -> 16, int8 -> 32
    # Per-row VMEM bytes:
    #   2x logits DMA buffers (double-buffered)            : 2 * c * itemsize
    #   f32 upcast + one live f32 temp + int32 col iota    : ~12 * c
    #   2x (block_n, 1) int32 target buffers, lane-padded  : 2 * 128 * 4
    per_row = 2 * c * itemsize + 12 * c + 1024
    block_n = (budget_bytes // per_row) // row_mult * row_mult
    block_n = max(row_mult, block_n)
    block_n = min(block_n, _round_up(n, row_mult))   # don't over-allocate tiny batches
    return int(block_n), int(per_row)


def _label_smoothing_kernel(preds_ref, target_ref, out_ref, *,
                            n_rows, n_classes, block_n, needs_mask):
    i = pl.program_id(0)

    x = preds_ref[...].astype(jnp.float32)     # (block_n, C), in-register upcast
    tgt = target_ref[...]                      # (block_n, 1) int32

    if needs_mask:
        row_ids = i * block_n + jax.lax.broadcasted_iota(jnp.int32, (block_n, 1), 0)
        valid = row_ids < n_rows               # (block_n, 1)
        # Zero-fill (NOT -inf): keeps lse finite for padded rows; their
        # contributions are re-masked to zero below.
        x = jnp.where(valid, x, 0.0)

    # Fused log-sum-exp; log_preds never materialized.
    row_max = jnp.max(x, axis=-1, keepdims=True)
    # TODO(synk): on v6e/v7x with bf16 logits the exp could use the bf16 EUP
    # path (cast (x - row_max) down, accumulate the sum in f32); kept in f32
    # for v5e compatibility and accuracy.
    lse = row_max + jnp.log(jnp.sum(jnp.exp(x - row_max), axis=-1, keepdims=True))
    sum_x = jnp.sum(x, axis=-1, keepdims=True)
    col = jax.lax.broadcasted_iota(jnp.int32, x.shape, 1)
    x_at_t = jnp.sum(jnp.where(col == tgt, x, 0.0), axis=-1, keepdims=True)

    smooth_rows = n_classes * lse - sum_x      # = -sum_c log_softmax(x)[c]
    nll_rows = lse - x_at_t                    # = -log_softmax(x)[target]
    if needs_mask:
        smooth_rows = jnp.where(valid, smooth_rows, 0.0)
        nll_rows = jnp.where(valid, nll_rows, 0.0)

    # Per-tile partial sums (mostly VPU vreg adds + one small final reduce),
    # written to this step's own lane-dense (8, 128) output block.  No resident
    # accumulator -> no init/finalize phases, no serial scalar RMW across grid
    # steps, and the grid axis stays fully parallel (TensorCore-shardable).
    smooth_tile = jnp.sum(smooth_rows)
    nll_tile = jnp.sum(nll_rows)
    sub = jax.lax.broadcasted_iota(jnp.int32, (8, 128), 0)
    lane = jax.lax.broadcasted_iota(jnp.int32, (8, 128), 1)
    out_ref[...] = jnp.where((sub == 0) & (lane == 0), smooth_tile,
                             jnp.where((sub == 0) & (lane == 1), nll_tile, 0.0))


def label_smoothing(preds, target, epsilon: float = 0.1, reduction: str = "mean",
                    *, block_rows=None):
    """preds: (N, C) float logits, target: (N,) int labels -> scalar loss."""
    if reduction not in ("mean", "sum"):
        # TODO(synk): reduction='none' (per-row loss tensor) not implemented.
        raise NotImplementedError("only reduction='mean' or 'sum' supported")

    n, c = preds.shape
    target2d = target.astype(jnp.int32).reshape(n, 1)
    itemsize = jnp.dtype(preds.dtype).itemsize

    budget = _vmem_budget_bytes()
    auto_block, per_row = _choose_block_rows(n, c, itemsize, budget)
    if block_rows is None:
        block_n = auto_block
    else:
        row_mult = max(8, 32 // itemsize)
        block_n = max(row_mult, (int(block_rows) // row_mult) * row_mult)
        block_n = min(block_n, _round_up(n, row_mult))

    n_tiles = pl.cdiv(n, block_n)
    needs_mask = (n % block_n) != 0

    kernel = functools.partial(
        _label_smoothing_kernel,
        n_rows=n, n_classes=float(c), block_n=block_n, needs_mask=needs_mask)

    # Scoped-VMEM request: full working set + fixed slack, clamped so it stays
    # comfortably inside the smallest per-core VMEM (v7x: 64 MiB physical).
    vmem_limit = int(min(max(block_n * per_row + (2 << 20), 16 << 20), 40 << 20))

    cost = pl.CostEstimate(
        flops=int(6 * n * c),
        transcendentals=int(n * c),
        bytes_accessed=int(n * c * itemsize + 4 * n + n_tiles * 8 * 128 * 4))

    out = pl.pallas_call(
        kernel,
        out_shape=jax.ShapeDtypeStruct((8, 128 * n_tiles), jnp.float32),
        grid=(n_tiles,),
        in_specs=[
            # TODO(synk): add pipeline_mode=pl.Buffered(3) here if v7x traces
            # show exposed DMA and the VMEM budget allows a third buffer.
            pl.BlockSpec((block_n, c), lambda i: (i, 0)),
            pl.BlockSpec((block_n, 1), lambda i: (i, 0)),
        ],
        out_specs=pl.BlockSpec((8, 128), lambda i: (0, i)),
        compiler_params=pltpu.CompilerParams(
            dimension_semantics=("parallel",),
            vmem_limit_bytes=vmem_limit),
        cost_estimate=cost,
    )(preds, target2d)

    # Tree-sum the per-tile partials in f32 (accuracy-friendly for large N).
    parts = out.reshape(8, n_tiles, 128)
    smooth_total = jnp.sum(parts[0, :, 0])
    nll_total = jnp.sum(parts[0, :, 1])
    denom = jnp.float32(n) if reduction == "mean" else jnp.float32(1.0)
    loss = smooth_total / denom
    nll = nll_total / denom
    return epsilon * (loss / c) + (1.0 - epsilon) * nll


def _reference(preds, target, epsilon=0.1):
    log_preds = jax.nn.log_softmax(preds.astype(jnp.float32), axis=-1)
    c = preds.shape[-1]
    loss = jnp.mean(-jnp.sum(log_preds, axis=-1))
    nll = jnp.mean(-jnp.take_along_axis(log_preds, target[:, None], axis=-1)[:, 0])
    return epsilon * (loss / c) + (1.0 - epsilon) * nll


if __name__ == "__main__":
    key = jax.random.PRNGKey(0)
    k1, k2, k3, k4, k5, k6 = jax.random.split(key, 6)

    # Test 1: small single-tile case (auto tile sizing).
    N, C = 8, 32
    preds = jax.random.normal(k1, (N, C), dtype=jnp.float32)
    target = jax.random.randint(k2, (N,), 0, C, dtype=jnp.int32)
    out = jax.block_until_ready(label_smoothing(preds, target, epsilon=0.1))
    ref = _reference(preds, target, epsilon=0.1)
    assert jnp.allclose(out, ref, rtol=1e-5, atol=1e-5), (out, ref)

    # Test 2: multiple tiles + partial tail tile (masking path), forced tile size.
    N2, C2 = 300, 64
    preds2 = jax.random.normal(k3, (N2, C2), dtype=jnp.float32)
    target2 = jax.random.randint(k4, (N2,), 0, C2, dtype=jnp.int32)
    out2 = jax.block_until_ready(
        label_smoothing(preds2, target2, epsilon=0.1, block_rows=64))
    ref2 = _reference(preds2, target2, epsilon=0.1)
    assert jnp.allclose(out2, ref2, rtol=1e-5, atol=1e-5), (out2, ref2)

    # Test 3: bf16 logits (in-register f32 upcast) + reduction='sum'.
    N3, C3 = 48, 32
    preds3 = jax.random.normal(k5, (N3, C3), dtype=jnp.float32).astype(jnp.bfloat16)
    target3 = jax.random.randint(k6, (N3,), 0, C3, dtype=jnp.int32)
    out3 = jax.block_until_ready(
        label_smoothing(preds3, target3, epsilon=0.1, reduction="sum", block_rows=16))
    ref3 = _reference(preds3.astype(jnp.float32), target3, epsilon=0.1) * N3
    assert jnp.allclose(out3, ref3, rtol=2e-3, atol=2e-3), (out3, ref3)

    print("KERNEL_OK")
</pallas_src>

<mosaic_0001>
module attributes {stable_mosaic.version = 11 : i64} {
  func.func @_label_smoothing_kernel(%arg0: i32, %arg1: memref<8x32xf32, #tpu.memory_space<vmem>>, %arg2: memref<8x1xi32, #tpu.memory_space<vmem>>, %arg3: memref<8x128xf32, #tpu.memory_space<vmem>>) attributes {dimension_semantics = [#tpu.dimension_semantics<parallel>], iteration_bounds = array<i64: 1>, scalar_prefetch = 0 : i64, scratch_operands = 0 : i64, tpu.core_type = #tpu.core_type<tc>, window_params = [{transform_indices = @transform_0, window_bounds = array<i64: 8, 32>}, {transform_indices = @transform_1, window_bounds = array<i64: 8, 1>}, {transform_indices = @transform_2, window_bounds = array<i64: 8, 128>}]} {
    %c0 = arith.constant 0 : index
    %c0_0 = arith.constant 0 : index
    %0 = vector.load %arg1[%c0, %c0_0] : memref<8x32xf32, #tpu.memory_space<vmem>>, vector<8x32xf32>
    %c0_1 = arith.constant 0 : index
    %c0_2 = arith.constant 0 : index
    %1 = vector.load %arg2[%c0_1, %c0_2] : memref<8x1xi32, #tpu.memory_space<vmem>>, vector<8x1xi32>
    %cst = arith.constant dense<0xFF800000> : vector<8xf32>
    %2 = vector.multi_reduction <maximumf>, %0, %cst [1] : vector<8x32xf32> to vector<8xf32>
    %3 = vector.shape_cast %2 : vector<8xf32> to vector<8x1xf32>
    %4 = vector.broadcast %3 : vector<8x1xf32> to vector<8x32xf32>
    %5 = arith.subf %0, %4 : vector<8x32xf32>
    %6 = math.exp %5 : vector<8x32xf32>
    %cst_3 = arith.constant dense<0.000000e+00> : vector<8xf32>
    %7 = vector.multi_reduction <add>, %6, %cst_3 [1] : vector<8x32xf32> to vector<8xf32>
    %8 = vector.shape_cast %7 : vector<8xf32> to vector<8x1xf32>
    %9 = math.log %8 : vector<8x1xf32>
    %10 = arith.addf %3, %9 : vector<8x1xf32>
    %cst_4 = arith.constant dense<0.000000e+00> : vector<8xf32>
    %11 = vector.multi_reduction <add>, %0, %cst_4 [1] : vector<8x32xf32> to vector<8xf32>
    %12 = vector.shape_cast %11 : vector<8xf32> to vector<8x1xf32>
    %13 = tpu.iota {dimensions = array<i32: 1>} : vector<8x32xi32>
    %14 = vector.broadcast %1 : vector<8x1xi32> to vector<8x32xi32>
    %15 = arith.cmpi eq, %13, %14 : vector<8x32xi32>
    %cst_5 = arith.constant 0.000000e+00 : f32
    %16 = vector.broadcast %cst_5 : f32 to vector<8x32xf32>
    %17 = arith.select %15, %0, %16 : vector<8x32xi1>, vector<8x32xf32>
    %cst_6 = arith.constant dense<0.000000e+00> : vector<8xf32>
    %18 = vector.multi_reduction <add>, %17, %cst_6 [1] : vector<8x32xf32> to vector<8xf32>
    %19 = vector.shape_cast %18 : vector<8xf32> to vector<8x1xf32>
    %cst_7 = arith.constant 3.200000e+01 : f32
    %20 = vector.broadcast %cst_7 : f32 to vector<8x1xf32>
    %21 = arith.mulf %20, %10 : vector<8x1xf32>
    %22 = arith.subf %21, %12 : vector<8x1xf32>
    %23 = arith.subf %10, %19 : vector<8x1xf32>
    %24 = vector.shape_cast %22 : vector<8x1xf32> to vector<1x8x1xf32>
    %cst_8 = arith.constant dense<0.000000e+00> : vector<1xf32>
    %25 = vector.multi_reduction <add>, %24, %cst_8 [1, 2] : vector<1x8x1xf32> to vector<1xf32>
    %26 = vector.shape_cast %25 : vector<1xf32> to vector<1x1x1xf32>
    %27 = vector.extract %26[0, 0, 0] : f32 from vector<1x1x1xf32>
    %28 = vector.shape_cast %23 : vector<8x1xf32> to vector<1x8x1xf32>
    %cst_9 = arith.constant dense<0.000000e+00> : vector<1xf32>
    %29 = vector.multi_reduction <add>, %28, %cst_9 [1, 2] : vector<1x8x1xf32> to vector<1xf32>
    %30 = vector.shape_cast %29 : vector<1xf32> to vector<1x1x1xf32>
    %31 = vector.extract %30[0, 0, 0] : f32 from vector<1x1x1xf32>
    %32 = tpu.iota {dimensions = array<i32: 0>} : vector<8x128xi32>
    %33 = tpu.iota {dimensions = array<i32: 1>} : vector<8x128xi32>
    %c0_i32 = arith.constant 0 : i32
    %34 = vector.broadcast %c0_i32 : i32 to vector<8x128xi32>
    %35 = arith.cmpi eq, %32, %34 : vector<8x128xi32>
    %c0_i32_10 = arith.constant 0 : i32
    %36 = vector.broadcast %c0_i32_10 : i32 to vector<8x128xi32>
    %37 = arith.cmpi eq, %33, %36 : vector<8x128xi32>
    %38 = arith.andi %35, %37 : vector<8x128xi1>
    %c0_i32_11 = arith.constant 0 : i32
    %39 = vector.broadcast %c0_i32_11 : i32 to vector<8x128xi32>
    %40 = arith.cmpi eq, %32, %39 : vector<8x128xi32>
    %c1_i32 = arith.constant 1 : i32
    %41 = vector.broadcast %c1_i32 : i32 to vector<8x128xi32>
    %42 = arith.cmpi eq, %33, %41 : vector<8x128xi32>
    %43 = arith.andi %40, %42 : vector<8x128xi1>
    %cst_12 = arith.constant 0.000000e+00 : f32
    %44 = vector.broadcast %31 : f32 to vector<8x128xf32>
    %45 = vector.broadcast %cst_12 : f32 to vector<8x128xf32>
    %46 = arith.select %43, %44, %45 : vector<8x128xi1>, vector<8x128xf32>
    %47 = vector.broadcast %27 : f32 to vector<8x128xf32>
    %48 = arith.select %38, %47, %46 : vector<8x128xi1>, vector<8x128xf32>
    %c0_13 = arith.constant 0 : index
    %c0_14 = arith.constant 0 : index
    %49 = vector.load %arg3[%c0_13, %c0_14] : memref<8x128xf32, #tpu.memory_space<vmem>>, vector<8x128xf32>
    tpu.vector_store %arg3[%c0_13, %c0_14], %48 {strides = array<i32>} : memref<8x128xf32, #tpu.memory_space<vmem>>, vector<8x128xf32>,
    return
  }
  func.func @transform_0(%arg0: i32) -> (i32, i32) {
    %c0_i32 = arith.constant 0 : i32
    %c0_i32_0 = arith.constant 0 : i32
    return %arg0, %c0_i32 : i32, i32
  }
  func.func @transform_1(%arg0: i32) -> (i32, i32) {
    %c0_i32 = arith.constant 0 : i32
    %c0_i32_0 = arith.constant 0 : i32
    return %arg0, %c0_i32 : i32, i32
  }
  func.func @transform_2(%arg0: i32) -> (i32, i32) {
    %c0_i32 = arith.constant 0 : i32
    %c0_i32_0 = arith.constant 0 : i32
    return %c0_i32, %arg0 : i32, i32
  }
}

</mosaic_0001>

<llo_original>
// kernel: tpu_custom_call.1
$region0: #{tpu_custom_call.1}
  #allocation0 [shape = 'u32[]', space=smem, size = 0x4, offset = 0x4, fixed_abs, tag = 'smem constant byte address 0x4 - core index']
  #allocation1 [shape = 'u32[72,128]{1,0:T(1,128)}', space=vmem, size = 0x9000, scoped, tag = 'internal scratch']
  %s0 = inlined_call_operand.vmem [shape: f32[8,32], index: 0, kind: input, shape index: {}]
  %s1 = inlined_call_operand.vmem [shape: s32[8,1], index: 1, kind: input, shape index: {}]
  %s2 = inlined_call_operand.hbm [shape: f32[8,128], index: 2, kind: output, shape index: {}]
  %s3 = sld [smem:[#allocation0]]
  $region18: #{tpu_custom_call.1} parent=0
    _
  %s5 = ssub.s32 1, %s3
  %s6 = scalar_select 0, %s5, %s3
  $region1: #{tpu_custom_call.1} parent=0
    #allocation2 [shape = 'u8[4096]{0}', space=vmem, size = 0x1000, scoped, tag = 'output window, operand 0, single buffered']
    #allocation3 [shape = 's32[1]{0}', space=sflag, size = 0x4, scoped, tag = 'scoped memory for tpu_custom_call.1']
    %7 = vsyncpa [#allocation3], 0
    // Predicated region
    $region2: #{tpu_custom_call.1} parent=1 // pred_check
      _
    $region3: #{tpu_custom_call.1} parent=1 // pred_check_branch
      %9 = sbr.rel (0) target = $region5
    $region4: #{tpu_custom_call.1} parent=1 // pred_region
      _
    $region5: #{tpu_custom_call.1} parent=1 // pred_fallthru
      _
    // Predicated region
    $region6: #{tpu_custom_call.1} parent=1 // pred_check
      _
    $region7: #{tpu_custom_call.1} parent=1 // pred_check_branch
      %11 = sbr.rel (0) target = $region9
    $region8: #{tpu_custom_call.1} parent=1 // pred_region
      _
    $region9: #{tpu_custom_call.1} parent=1 // pred_fallthru
      _
    %v12 = vld [vmem:[%s0] sm:$0xff]
    %v13 = vld [vmem:[%s1] sm:$0xff]
    %vm14 = vcmask 261120
    %v15 = vsel %vm14, %v12, -inf
    %16 = vmax.xlane.f32.xlu0 %v15
    %v17 = vpop.xlane.xlu0 %16
    %v18 = vsub.f32 %v12, %v17
    %v19 = vmul.f32 %v18, 1.442695
    %v20 = vpow.pop %v19
    %v21 = vsel %vm14, %v20, 0.0
    %22 = vadd.xlane.f32.xlu0 %v21
    %v23 = vpop.xlane.xlu0 %22
    %v24 = vlog2.pop %v23
    %v25 = vmul.f32 %v24, 0.6931472
    %v26 = vadd.f32 %v17, %v25
    %v27 = vsel %vm14, %v12, 0.0
    %28 = vadd.xlane.f32.xlu0 %v27
    %v29 = vpop.xlane.xlu0 %28
    %v30 = vlaneseq
    %v31 = vand.u32 %v30, 127
    %32 = vset.pattern.permute.xlu0 0
    %33 = vperm.xlu0 %32, %v13
    %v34 = vpop.permute.xlu0 %33
    %vm35 = vcmp.eq.s32.totalorder %v31, %v34
    %v36 = vsel %vm35, %v12, 0.0
    %v37 = vsel %vm14, %v36, 0.0
    %38 = vadd.xlane.f32.xlu0 %v37
    %v39 = vpop.xlane.xlu0 %38
    %v40 = vmul.f32 %v26, 32.0
    %v41 = vsub.f32 %v40, %v29
    %v42 = vsub.f32 %v26, %v39
    %vm43 = vcmask 7168
    %v44 = vsel %vm43, %v41, 0.0
    %45 = vadd.xlane.f32.xlu0 %v44
    %v46 = vpop.xlane.xlu0 %45
    %v47 = vrot.slane %v46, 4
    %v48 = vadd.f32 %v46, %v47
    %v49 = vrot.slane %v48, 2
    %v50 = vadd.f32 %v48, %v49
    %v51 = vrot.slane %v50, 1
    %v52 = vadd.f32 %v50, %v51
    %s53 = vtos %v52
    %v54 = vsel %vm43, %v42, 0.0
    %55 = vadd.xlane.f32.xlu0 %v54
    %v56 = vpop.xlane.xlu0 %55
    %v57 = vrot.slane %v56, 4
    %v58 = vadd.f32 %v56, %v57
    %v59 = vrot.slane %v58, 2
    %v60 = vadd.f32 %v58, %v59
    %v61 = vrot.slane %v60, 1
    %v62 = vadd.f32 %v60, %v61
    %s63 = vtos %v62
    %v64 = vlaneseq
    %v65 = vshrl.u32 %v64, 7
    %vm66 = vcmp.eq.s32.totalorder %v65, 0
    %vm67 = vcmp.eq.s32.totalorder %v31, 0
    %vm68 = vmand %vm66, %vm67
    %vm69 = vcmp.eq.s32.totalorder %v31, 1
    %vm70 = vmand %vm66, %vm69
    %v71 = vstv %s63
    %v72 = vsel %vm70, %v71, 0.0
    %v73 = vstv %s53
    %v74 = vsel %vm68, %v73, %v72
    %75 = vst [vmem:[#allocation2] sm:$0xff] %v74
    // Predicated region
    $region10: #{tpu_custom_call.1} parent=1 // pred_check
      _
    $region11: #{tpu_custom_call.1} parent=1 // pred_check_branch
      %77 = sbr.rel (0) target = $region13
    $region12: #{tpu_custom_call.1} parent=1 // pred_region
      %79 = vsyncadd [#allocation3], 0
      %s81 = sshll.u32 [#allocation2], 4
      %s82 = int_to_ptr.vmem [resolvable:$true] %s81
      %s83 = sshll.u32 %s2, 4
      %s84 = int_to_ptr.hbm [resolvable:$true] %s83
      %86 = dma.vmem_to_hbm [thread:$0]  %s82, 128, %s84, [#allocation3]
    $region13: #{tpu_custom_call.1} parent=1 // pred_fallthru
      _
    // Predicated region
    $region14: #{tpu_custom_call.1} parent=1 // pred_check
      _
    $region15: #{tpu_custom_call.1} parent=1 // pred_check_branch
      %88 = sbr.rel (0) target = $region17
    $region16: #{tpu_custom_call.1} parent=1 // pred_region
      %90 = dma.done [#allocation3], 128
    $region17: #{tpu_custom_call.1} parent=1 // pred_fallthru
      _
    %91 = vsyncpa [#allocation3], 1

</llo_original>
